<compile_context>
chip_gen: v6e
topology: v6e:2x2x1
jax: 0.10.0
libtpu: 0.0.40
codegen_flags: <defaults>
</compile_context>

<pallas_src>
import functools

import jax
import jax.numpy as jnp
from jax import lax
from jax.experimental import pallas as pl
from jax.experimental.pallas import tpu as pltpu


def _round_up(x, m):
    return ((x + m - 1) // m) * m


def _pick_tk(k_pad, tk):
    """Largest multiple of 128 that is <= tk and divides k_pad."""
    tk = max(128, min(tk, k_pad))
    tk = (tk // 128) * 128
    while k_pad % tk:
        tk -= 128
    return tk


def prepare_memory_bank(memory_bank, *, tk=1024, compute_dtype=jnp.bfloat16):
    """One-time bank preparation: (K, D) -> (D, K_pad) in compute_dtype.

    Store the result persistently and reuse it across calls; doing this per
    call costs a full extra K*D HBM read+write.  Padded columns are EXACT
    zeros -- the kernel's pad correction depends on that.
    Returns (bank_t_padded, K_actual).
    """
    K, D = memory_bank.shape
    tk_eff = min(tk, _round_up(K, 128))
    K_pad = _round_up(K, tk_eff)
    bank_t = memory_bank.T.astype(compute_dtype)
    if K_pad != K:
        bank_t = jnp.pad(bank_t, ((0, 0), (0, K_pad - K)))
    return bank_t, K


def _point_loss_kernel(pts_ref, bank_ref, *refs, inv_t, pad_cols, emit_sim):
    if emit_sim:
        sim_ref, rsum_ref, norm_ref = refs
    else:
        rsum_ref, norm_ref = refs
        sim_ref = None

    k = pl.program_id(1)
    nk = pl.num_programs(1)

    # --- init (once per row block; K is the innermost grid axis) -----------
    @pl.when(k == 0)
    def _init():
        pts = pts_ref[...].astype(jnp.float32)
        inv_norm = lax.rsqrt(jnp.sum(pts * pts, axis=1, keepdims=True))  # eps-free
        # Loss-only path: fold 1/t into the cached rows (sim/t == (norm/t) @ bank),
        # dropping the per-tile (TN, TK) multiply.
        scale = inv_norm if emit_sim else inv_norm * inv_t
        norm_ref[...] = (pts * scale).astype(norm_ref.dtype)
        rsum_ref[...] = jnp.zeros_like(rsum_ref)

    # --- (TN, D) @ (D, TK) on the MXU, f32 accumulation ---------------------
    logits = jnp.dot(norm_ref[...], bank_ref[...],
                     preferred_element_type=jnp.float32)          # (TN, TK) f32
    if emit_sim:
        sim_ref[...] = logits.astype(sim_ref.dtype)
        logits = logits * inv_t

    # --- online accumulation of exp row sums (resident output block) -------
    rsum_ref[...] += jnp.sum(jnp.exp(logits), axis=1, keepdims=True)

    if pad_cols:
        @pl.when(k == nk - 1)
        def _fix_pad():
            # Padded bank columns are exact zeros -> each contributed exp(0)=1.
            rsum_ref[...] -= jnp.float32(pad_cols)


def point_loss_prepared(points, point_indices, bank_t_pad, k_actual, t, *,
                        tn=256, tk=1024, return_similarities=True,
                        sim_dtype=jnp.float32):
    """points: (N, D) f32, point_indices: (N,) int, bank_t_pad: (D, K_pad).

    bank_t_pad comes from prepare_memory_bank (compute dtype = its dtype).
    Returns (loss, similarities[:N, :K]) or just loss if
    return_similarities=False.
    """
    N, D = points.shape
    Db, K_pad = bank_t_pad.shape
    assert Db == D, "bank feature dim mismatch"
    K = int(k_actual)
    compute_dtype = bank_t_pad.dtype

    # Tile selection.  TN large => the bank streams few times from HBM.
    # (On v7x, if N is large, keep N_pad/TN >= 2 so both TensorCores get work.)
    TN = min(_round_up(tn, 8), _round_up(N, 8))
    N_pad = _round_up(N, TN)
    TK = _pick_tk(K_pad, tk)
    pad_cols = K_pad - K
    inv_t = 1.0 / float(t)

    pts = points.astype(jnp.float32)
    if N_pad != N:
        # Pad with ones: avoids NaN in the eps-free normalization; these rows
        # are dropped from the mean below.
        pts = jnp.concatenate(
            [pts, jnp.ones((N_pad - N, D), jnp.float32)], axis=0)

    kernel = functools.partial(_point_loss_kernel, inv_t=inv_t,
                               pad_cols=pad_cols,
                               emit_sim=return_similarities)

    grid = (N_pad // TN, K_pad // TK)
    in_specs = [
        pl.BlockSpec((TN, D), lambda i, k: (i, 0)),       # points row block
        pl.BlockSpec((D, TK), lambda i, k: (0, k)),       # bank.T tile
    ]
    rsum_spec = pl.BlockSpec((TN, 1), lambda i, k: (i, 0))  # resident accumulator
    rsum_shape = jax.ShapeDtypeStruct((N_pad, 1), jnp.float32)
    if return_similarities:
        out_specs = (pl.BlockSpec((TN, TK), lambda i, k: (i, k)), rsum_spec)
        out_shape = (jax.ShapeDtypeStruct((N_pad, K_pad), sim_dtype), rsum_shape)
    else:
        out_specs = rsum_spec
        out_shape = rsum_shape

    bank_bytes = (N_pad // TN) * D * K_pad * bank_t_pad.dtype.itemsize
    sim_bytes = (N_pad * K_pad * jnp.dtype(sim_dtype).itemsize
                 if return_similarities else 0)
    cost = pl.CostEstimate(
        flops=2 * N_pad * K_pad * D,
        transcendentals=N_pad * K_pad,
        bytes_accessed=N_pad * D * 4 + bank_bytes + sim_bytes + N_pad * 4)

    out = pl.pallas_call(
        kernel,
        grid=grid,
        in_specs=in_specs,
        out_specs=out_specs,
        out_shape=out_shape,
        scratch_shapes=[
            pltpu.VMEM((TN, D), compute_dtype),   # normalized points, reused over K
        ],
        compiler_params=pltpu.CompilerParams(
            dimension_semantics=("parallel", "arbitrary")),
        cost_estimate=cost,
    )(pts, bank_t_pad)

    if return_similarities:
        sim_pad, rsum_pad = out
        sim = sim_pad[:N, :K]
    else:
        rsum_pad = out
        sim = None
    row_sum = rsum_pad[:N, 0]

    # Positive similarity: tiny (N, D) gather + dot in plain JAX (moved out of
    # the kernel -> no per-tile select / iota / extra cross-lane reduce).
    idx = point_indices.astype(jnp.int32)
    norm_pts = points / jnp.sqrt(jnp.sum(points ** 2, axis=1, keepdims=True))
    bank_cols = jnp.take(bank_t_pad, idx, axis=1).astype(jnp.float32)   # (D, N)
    pos = jnp.exp(jnp.sum(norm_pts * bank_cols.T, axis=1) * inv_t)

    loss = -jnp.mean(jnp.log(pos / row_sum + 1e-7))
    if return_similarities:
        return loss, sim
    return loss


def point_loss(points, point_indices, memory_bank, t, *, tn=256, tk=1024,
               compute_dtype=jnp.bfloat16, return_similarities=True,
               sim_dtype=jnp.float32):
    """Convenience wrapper taking the raw (K, D) memory bank.

    NOTE: production code should call prepare_memory_bank() ONCE and keep the
    (D, K_pad) compute_dtype array persistently; the per-call transpose/cast/
    pad below costs a full extra K*D HBM read+write.
    """
    bank_t_pad, k_actual = prepare_memory_bank(
        memory_bank, tk=tk, compute_dtype=compute_dtype)
    return point_loss_prepared(points, point_indices, bank_t_pad, k_actual, t,
                               tn=tn, tk=tk,
                               return_similarities=return_similarities,
                               sim_dtype=sim_dtype)


def _reference(points, point_indices, memory_bank, t):
    norm = points / jnp.sqrt(jnp.sum(points ** 2, axis=1, keepdims=True))
    sim = norm @ memory_bank.T
    es = jnp.exp(sim / t)
    pos = es[jnp.arange(points.shape[0]), point_indices]
    loss = -jnp.mean(jnp.log(pos / jnp.sum(es, axis=1) + 1e-7))
    return loss, sim


if __name__ == "__main__":
    key = jax.random.PRNGKey(0)
    k1, k2, k3 = jax.random.split(key, 3)

    N, D, K = 8, 32, 200      # N points, feature dim D, memory bank size K
    t = 0.07

    points = jax.random.normal(k1, (N, D), dtype=jnp.float32)
    bank = jax.random.normal(k2, (K, D), dtype=jnp.float32)
    bank = bank / jnp.sqrt(jnp.sum(bank ** 2, axis=1, keepdims=True))
    point_indices = jax.random.randint(k3, (N,), 0, K, dtype=jnp.int32)

    ref_loss, ref_sim = _reference(points, point_indices, bank, t)

    # 1) f32 path with similarities; tk=128 forces a multi-step K reduction
    #    (K_pad=256 -> 2 tiles) exercising the pad-correction + accumulation.
    loss, sim = point_loss(points, point_indices, bank, t,
                           compute_dtype=jnp.float32, tk=128)
    jax.block_until_ready((loss, sim))
    assert jnp.allclose(sim, ref_sim, atol=1e-4, rtol=1e-4)
    assert jnp.allclose(loss, ref_loss, atol=1e-4, rtol=1e-4)

    # 2) f32 loss-only path (no (N, K) sim materialized; 1/t folded in-kernel).
    bank_prep_f32, k_act = prepare_memory_bank(bank, tk=128,
                                               compute_dtype=jnp.float32)
    loss_only = point_loss_prepared(points, point_indices, bank_prep_f32, k_act,
                                    t, tk=128, return_similarities=False)
    jax.block_until_ready(loss_only)
    assert jnp.allclose(loss_only, ref_loss, atol=1e-4, rtol=1e-4)

    # 3) bf16 production path (bank streamed in bf16, f32 accumulation).
    #    Relaxed tolerance: bf16 deviates beyond 1e-4 from the f32 reference.
    bank_prep_bf16, k_act = prepare_memory_bank(bank, compute_dtype=jnp.bfloat16)
    loss_bf16 = point_loss_prepared(points, point_indices, bank_prep_bf16, k_act,
                                    t, return_similarities=False)
    jax.block_until_ready(loss_bf16)
    assert jnp.abs(loss_bf16 - ref_loss) / jnp.abs(ref_loss) < 0.05

    print("KERNEL_OK")
</pallas_src>

<mosaic_0001>
module attributes {stable_mosaic.version = 11 : i64} {
  func.func @_point_loss_kernel(%arg0: i32, %arg1: i32, %arg2: memref<8x32xf32, #tpu.memory_space<vmem>>, %arg3: memref<32x128xf32, #tpu.memory_space<vmem>>, %arg4: memref<8x128xf32, #tpu.memory_space<vmem>>, %arg5: memref<8x1xf32, #tpu.memory_space<vmem>>, %arg6: memref<8x32xf32, #tpu.memory_space<vmem>>) attributes {dimension_semantics = [#tpu.dimension_semantics<parallel>, #tpu.dimension_semantics<arbitrary>], iteration_bounds = array<i64: 1, 2>, scalar_prefetch = 0 : i64, scratch_operands = 1 : i64, tpu.core_type = #tpu.core_type<tc>, window_params = [{transform_indices = @transform_0, window_bounds = array<i64: 8, 32>}, {transform_indices = @transform_1, window_bounds = array<i64: 32, 128>}, {transform_indices = @transform_2, window_bounds = array<i64: 8, 128>}, {transform_indices = @transform_3, window_bounds = array<i64: 8, 1>}]} {
    %c0_i32 = arith.constant 0 : i32
    %0 = arith.cmpi eq, %arg1, %c0_i32 : i32
    %1 = arith.extui %0 : i1 to i32
    %c0_i32_0 = arith.constant 0 : i32
    %2 = arith.cmpi ne, %1, %c0_i32_0 : i32
    scf.if %2 {
      %c0_13 = arith.constant 0 : index
      %c0_14 = arith.constant 0 : index
      %18 = vector.load %arg2[%c0_13, %c0_14] : memref<8x32xf32, #tpu.memory_space<vmem>>, vector<8x32xf32>
      %19 = arith.mulf %18, %18 : vector<8x32xf32>
      %cst_15 = arith.constant dense<0.000000e+00> : vector<8xf32>
      %20 = vector.multi_reduction <add>, %19, %cst_15 [1] : vector<8x32xf32> to vector<8xf32>
      %21 = vector.shape_cast %20 : vector<8xf32> to vector<8x1xf32>
      %22 = math.rsqrt %21 : vector<8x1xf32>
      %23 = vector.broadcast %22 : vector<8x1xf32> to vector<8x32xf32>
      %24 = arith.mulf %18, %23 : vector<8x32xf32>
      %c0_16 = arith.constant 0 : index
      %c0_17 = arith.constant 0 : index
      %25 = vector.load %arg6[%c0_16, %c0_17] : memref<8x32xf32, #tpu.memory_space<vmem>>, vector<8x32xf32>
      tpu.vector_store %arg6[%c0_16, %c0_17], %24 {strides = array<i32>} : memref<8x32xf32, #tpu.memory_space<vmem>>, vector<8x32xf32>,
      %cst_18 = arith.constant 0.000000e+00 : f32
      %26 = vector.broadcast %cst_18 : f32 to vector<8x1xf32>
      %c0_19 = arith.constant 0 : index
      %c0_20 = arith.constant 0 : index
      %27 = vector.load %arg5[%c0_19, %c0_20] : memref<8x1xf32, #tpu.memory_space<vmem>>, vector<8x1xf32>
      tpu.vector_store %arg5[%c0_19, %c0_20], %26 {strides = array<i32>} : memref<8x1xf32, #tpu.memory_space<vmem>>, vector<8x1xf32>,
    } else {
    }
    %c0 = arith.constant 0 : index
    %c0_1 = arith.constant 0 : index
    %3 = vector.load %arg6[%c0, %c0_1] : memref<8x32xf32, #tpu.memory_space<vmem>>, vector<8x32xf32>
    %c0_2 = arith.constant 0 : index
    %c0_3 = arith.constant 0 : index
    %4 = vector.load %arg3[%c0_2, %c0_3] : memref<32x128xf32, #tpu.memory_space<vmem>>, vector<32x128xf32>
    %cst = arith.constant dense<0.000000e+00> : vector<8x128xf32>
    %5 = tpu.matmul %3, %4, %cst {dimension_numbers = #tpu.dot_dimension_numbers<[1], [0], [0], [1], [0, 0, 1, 1], [], []>} : vector<8x32xf32>, vector<32x128xf32>, vector<8x128xf32> -> vector<8x128xf32>
    %c0_4 = arith.constant 0 : index
    %c0_5 = arith.constant 0 : index
    %6 = vector.load %arg4[%c0_4, %c0_5] : memref<8x128xf32, #tpu.memory_space<vmem>>, vector<8x128xf32>
    tpu.vector_store %arg4[%c0_4, %c0_5], %5 {strides = array<i32>} : memref<8x128xf32, #tpu.memory_space<vmem>>, vector<8x128xf32>,
    %cst_6 = arith.constant 14.2857141 : f32
    %7 = vector.broadcast %cst_6 : f32 to vector<8x128xf32>
    %8 = arith.mulf %5, %7 : vector<8x128xf32>
    %c0_7 = arith.constant 0 : index
    %c0_8 = arith.constant 0 : index
    %9 = vector.load %arg5[%c0_7, %c0_8] : memref<8x1xf32, #tpu.memory_space<vmem>>, vector<8x1xf32>
    %10 = math.exp %8 : vector<8x128xf32>
    %cst_9 = arith.constant dense<0.000000e+00> : vector<8xf32>
    %11 = vector.multi_reduction <add>, %10, %cst_9 [1] : vector<8x128xf32> to vector<8xf32>
    %12 = vector.shape_cast %11 : vector<8xf32> to vector<8x1xf32>
    %13 = arith.addf %9, %12 : vector<8x1xf32>
    %c0_10 = arith.constant 0 : index
    %c0_11 = arith.constant 0 : index
    %14 = vector.load %arg5[%c0_10, %c0_11] : memref<8x1xf32, #tpu.memory_space<vmem>>, vector<8x1xf32>
    tpu.vector_store %arg5[%c0_10, %c0_11], %13 {strides = array<i32>} : memref<8x1xf32, #tpu.memory_space<vmem>>, vector<8x1xf32>,
    %c1_i32 = arith.constant 1 : i32
    %15 = arith.cmpi eq, %arg1, %c1_i32 : i32
    %16 = arith.extui %15 : i1 to i32
    %c0_i32_12 = arith.constant 0 : i32
    %17 = arith.cmpi ne, %16, %c0_i32_12 : i32
    scf.if %17 {
      %c0_13 = arith.constant 0 : index
      %c0_14 = arith.constant 0 : index
      %18 = vector.load %arg5[%c0_13, %c0_14] : memref<8x1xf32, #tpu.memory_space<vmem>>, vector<8x1xf32>
      %cst_15 = arith.constant 5.600000e+01 : f32
      %19 = vector.broadcast %cst_15 : f32 to vector<8x1xf32>
      %20 = arith.subf %18, %19 : vector<8x1xf32>
      %c0_16 = arith.constant 0 : index
      %c0_17 = arith.constant 0 : index
      %21 = vector.load %arg5[%c0_16, %c0_17] : memref<8x1xf32, #tpu.memory_space<vmem>>, vector<8x1xf32>
      tpu.vector_store %arg5[%c0_16, %c0_17], %20 {strides = array<i32>} : memref<8x1xf32, #tpu.memory_space<vmem>>, vector<8x1xf32>,
    } else {
    }
    return
  }
  func.func @transform_0(%arg0: i32, %arg1: i32) -> (i32, i32) {
    %c0_i32 = arith.constant 0 : i32
    %c0_i32_0 = arith.constant 0 : i32
    return %arg0, %c0_i32 : i32, i32
  }
  func.func @transform_1(%arg0: i32, %arg1: i32) -> (i32, i32) {
    %c0_i32 = arith.constant 0 : i32
    %c0_i32_0 = arith.constant 0 : i32
    return %c0_i32, %arg1 : i32, i32
  }
  func.func @transform_2(%arg0: i32, %arg1: i32) -> (i32, i32) {
    %c0_i32 = arith.constant 0 : i32
    return %arg0, %arg1 : i32, i32
  }
  func.func @transform_3(%arg0: i32, %arg1: i32) -> (i32, i32) {
    %c0_i32 = arith.constant 0 : i32
    %c0_i32_0 = arith.constant 0 : i32
    return %arg0, %c0_i32 : i32, i32
  }
}

</mosaic_0001>

<llo_original>
// kernel: tpu_custom_call.1
$region0: #{tpu_custom_call.1}
  #allocation0 [shape = 'u32[]', space=smem, size = 0x4, offset = 0x4, fixed_abs, tag = 'smem constant byte address 0x4 - core index']
  #allocation1 [shape = 'u32[144,128]{1,0:T(1,128)}', space=vmem, size = 0x12000, scoped, tag = 'internal scratch']
  #allocation2 [shape = 'f32[8,32]{1,0:T(8,128)}', space=vmem, size = 0x1000, scoped, tag = 'scratch operand']
  %s0 = inlined_call_operand.hbm [shape: f32[8,32], index: 0, kind: input, shape index: {}]
  %s1 = inlined_call_operand.hbm [shape: f32[32,256], index: 1, kind: input, shape index: {}]
  %s2 = inlined_call_operand.hbm [shape: f32[8,256], index: 2, kind: output, shape index: {0}]
  %s3 = inlined_call_operand.vmem [shape: f32[8,1], index: 3, kind: output, shape index: {1}]
  %4 = xla_tuple %s2, %s3
  %s5 = sld [smem:[#allocation0]]
  $region65: #{tpu_custom_call.1} parent=0
    _
  %s7 = ssub.s32 1, %s5
  %s8 = scalar_select 0, %s7, %s5
  $region1: #{tpu_custom_call.1} parent=0
    #allocation3 [shape = 'u8[4096]{0}', space=vmem, size = 0x1000, scoped, tag = 'input window, operand 0, single buffered']
    #allocation4 [shape = 's32[2]{0}', space=sflag, size = 0x8, scoped, tag = 'scoped memory for tpu_custom_call.1']
    #allocation5 [shape = 's32[2]{0}', space=sflag, size = 0x8, scoped, tag = 'scoped memory for tpu_custom_call.1']
    #allocation6 [shape = 'u8[32768]{0}', space=vmem, size = 0x8000, scoped, tag = 'input window, operand 1']
    #allocation7 [shape = 's32[2]{0}', space=sflag, size = 0x8, scoped, tag = 'scoped memory for tpu_custom_call.1']
    #allocation8 [shape = 'u8[8192]{0}', space=vmem, size = 0x2000, scoped, tag = 'output window, operand 0']
    %9 = vsyncpa [#allocation4], 0
    %10 = vsyncpa [#allocation7], 0
    %s11 = scalar_lea.sflag [#allocation7], 1
    %12 = vsyncpa %s11, 0
    %13 = vsyncpa [#allocation5], 0
    %s14 = scalar_lea.sflag [#allocation5], 1
    %15 = vsyncpa %s14, 0
    loop: start=0, step=1, limit=4
    $region2: #{tpu_custom_call.1} parent=1 // loop_pre_header
      _
    $region3: #{tpu_custom_call.1} parent=1 // loop_header
      %s17 = sphi 0, %s21
      %p18 = scmp.ge.s32.totalorder %s17, 4
      %s24 = sphi 0, %s36
      %s25 = sphi 0, %s32
      %s26 = sphi 0, %s24
      %s27 = sphi 0, %s25
      %s28 = sphi 0, %s26
      %s29 = sphi 0, %s27
      %s39 = sphi 0, %s41
      %s42 = sphi 0, %s39
      %s43 = sphi 0, %s42
      %s59 = sphi 0, %s43
      %s65 = sphi 0, %s67
      %s68 = sphi 0, %s65
      %s69 = sphi 0, %s68
      %s85 = sphi 0, %s69
      %s93 = sphi 0, %s95
      %s96 = sphi 0, %s93
      %s97 = sphi 0, %s96
      %s113 = sphi 0, %s97
      %s119 = sphi 0, %s121
      %s122 = sphi 0, %s119
      %s123 = sphi 0, %s122
      %s139 = sphi 0, %s123
    $region4: #{tpu_custom_call.1} parent=1 // loop_header_branch
      %20 = sbr.rel (%p18) target = $region8
    $region5: #{tpu_custom_call.1} parent=1 // loop_body
      %s22 = ssub.s32 %s17, 1
      %s23 = ssub.s32 %s17, 2
      %s30 = sadd.s32 1, %s25
      %p31 = scmp.ge.s32.totalorder %s30, 2
      %s32 = scalar_select %p31, 0, %s30
      %s33 = sadd.s32 1, %s24
      %s34 = scalar_select %p31, %s33, %s24
      %p35 = scmp.ge.s32.totalorder %s34, 1
      %s36 = scalar_select %p35, 0, %s34
      %s37 = ssub.s32 %s24, %s36
      %p38 = scmp.eq.s32.totalorder %s37, 0
      %s40 = sadd.s32 %s39, 1
      %s41 = scalar_select %p38, %s39, %s40
      %p44 = pneg %p38
      %p45 = scmp.eq.s32.totalorder %s17, 1
      %p46 = por %p44, %p45
      %p47 = scmp.ne.s32.totalorder %s39, %s42
      %p48 = scmp.eq.s32.totalorder %s17, 0
      %p49 = por %p47, %p48
      %p50 = scmp.ne.s32.totalorder %s39, %s42
      %p51 = scmp.eq.s32.totalorder %s22, 1
      %p52 = por %p50, %p51
      %p53 = scmp.ne.s32.totalorder %s42, %s43
      %p54 = scmp.eq.s32.totalorder %s22, 0
      %p55 = por %p53, %p54
      %p56 = scmp.ne.s32.totalorder %s42, %s43
      %p57 = scmp.eq.s32.totalorder %s23, 1
      %p58 = por %p56, %p57
      %p60 = scmp.ne.s32.totalorder %s43, %s59
      %p61 = scmp.eq.s32.totalorder %s23, 0
      %p62 = por %p60, %p61
      %s63 = ssub.s32 %s25, %s32
      %p64 = scmp.eq.s32.totalorder %s63, 0
      %s66 = sadd.s32 %s65, 1
      %s67 = scalar_select %p64, %s65, %s66
      %p70 = pneg %p64
      %p71 = scmp.eq.s32.totalorder %s17, 1
      %p72 = por %p70, %p71
      %p73 = scmp.ne.s32.totalorder %s65, %s68
      %p74 = scmp.eq.s32.totalorder %s17, 0
      %p75 = por %p73, %p74
      %p76 = scmp.ne.s32.totalorder %s65, %s68
      %p77 = scmp.eq.s32.totalorder %s22, 1
      %p78 = por %p76, %p77
      %p79 = scmp.ne.s32.totalorder %s68, %s69
      %p80 = scmp.eq.s32.totalorder %s22, 0
      %p81 = por %p79, %p80
      %p82 = scmp.ne.s32.totalorder %s68, %s69
      %p83 = scmp.eq.s32.totalorder %s23, 1
      %p84 = por %p82, %p83
      %p86 = scmp.ne.s32.totalorder %s69, %s85
      %p87 = scmp.eq.s32.totalorder %s23, 0
      %p88 = por %p86, %p87
      %s89 = ssub.s32 %s24, %s36
      %s90 = ssub.s32 %s25, %s32
      %s91 = sor.u32 %s89, %s90
      %p92 = scmp.eq.s32.totalorder %s91, 0
      %s94 = sadd.s32 %s93, 1
      %s95 = scalar_select %p92, %s93, %s94
      %p98 = pneg %p92
      %p99 = scmp.eq.s32.totalorder %s17, 1
      %p100 = por %p98, %p99
      %p101 = scmp.ne.s32.totalorder %s93, %s96
      %p102 = scmp.eq.s32.totalorder %s17, 0
      %p103 = por %p101, %p102
      %p104 = scmp.ne.s32.totalorder %s93, %s96
      %p105 = scmp.eq.s32.totalorder %s22, 1
      %p106 = por %p104, %p105
      %p107 = scmp.ne.s32.totalorder %s96, %s97
      %p108 = scmp.eq.s32.totalorder %s22, 0
      %p109 = por %p107, %p108
      %p110 = scmp.ne.s32.totalorder %s96, %s97
      %p111 = scmp.eq.s32.totalorder %s23, 1
      %p112 = por %p110, %p111
      %p114 = scmp.ne.s32.totalorder %s97, %s113
      %p115 = scmp.eq.s32.totalorder %s23, 0
      %p116 = por %p114, %p115
      %s117 = ssub.s32 %s24, %s36
      %p118 = scmp.eq.s32.totalorder %s117, 0
      %s120 = sadd.s32 %s119, 1
      %s121 = scalar_select %p118, %s119, %s120
      %p124 = pneg %p118
      %p125 = scmp.eq.s32.totalorder %s17, 1
      %p126 = por %p124, %p125
      %p127 = scmp.ne.s32.totalorder %s119, %s122
      %p128 = scmp.eq.s32.totalorder %s17, 0
      %p129 = por %p127, %p128
      %p130 = scmp.ne.s32.totalorder %s119, %s122
      %p131 = scmp.eq.s32.totalorder %s22, 1
      %p132 = por %p130, %p131
      %p133 = scmp.ne.s32.totalorder %s122, %s123
      %p134 = scmp.eq.s32.totalorder %s22, 0
      %p135 = por %p133, %p134
      %p136 = scmp.ne.s32.totalorder %s122, %s123
      %p137 = scmp.eq.s32.totalorder %s23, 1
      %p138 = por %p136, %p137
      %p140 = scmp.ne.s32.totalorder %s123, %s139
      %p141 = scmp.eq.s32.totalorder %s23, 0
      %p142 = por %p140, %p141
      %p143 = scmp.le.s32.totalorder 1, %s17
      %p144 = scmp.lt.s32.totalorder %s17, 3
      %p145 = pnand %p143, %p144
      %p146 = pneg %p145
      // Predicated region
      $region9: #{tpu_custom_call.1} parent=5 // pred_check
        _
      $region10: #{tpu_custom_call.1} parent=5 // pred_check_branch
        %148 = sbr.rel (%p145) target = $region12
      $region11: #{tpu_custom_call.1} parent=5 // pred_region
        %s149 = ssub.s32 %s17, 1
        // Predicated region
        $region13: #{tpu_custom_call.1} parent=11 // pred_check
          %p150 = pneg %p55
        $region14: #{tpu_custom_call.1} parent=11 // pred_check_branch
          %152 = sbr.rel (%p150) target = $region16
        $region15: #{tpu_custom_call.1} parent=11 // pred_region
          %s154 = ssub.s32 128, 128
          %155 = vsyncadd [#allocation4], %s154
          %s156 = smul.addr %s26, 128
          %s157 = scalar_lea.hbm %s0, %s156
          %s159 = sshll.u32 [#allocation3], 4
          %s160 = int_to_ptr.vmem [resolvable:$true] %s159
          %162 = dma.hbm_to_vmem [thread:$0]  %s157, 128, %s160, [#allocation4]
        $region16: #{tpu_custom_call.1} parent=11 // pred_fallthru
          _
      $region12: #{tpu_custom_call.1} parent=5 // pred_fallthru
        _
      %p163 = scmp.lt.s32.totalorder %s17, 2
      // Predicated region
      $region17: #{tpu_custom_call.1} parent=5 // pred_check
        %p164 = pneg %p163
      $region18: #{tpu_custom_call.1} parent=5 // pred_check_branch
        %166 = sbr.rel (%p164) target = $region20
      $region19: #{tpu_custom_call.1} parent=5 // pred_region
        // Predicated region
        $region21: #{tpu_custom_call.1} parent=19 // pred_check
          %p167 = pneg %p75
        $region22: #{tpu_custom_call.1} parent=19 // pred_check_branch
          %169 = sbr.rel (%p167) target = $region24
        $region23: #{tpu_custom_call.1} parent=19 // pred_region
          %s170 = sand.u32 %s65, 1
          %s171 = scalar_lea.sflag [#allocation7], %s170
          %s172 = sand.u32 %s65, 1
          %s173 = smul.addr %s172, 32
          %s174 = scalar_lea.vmem [#allocation6], %s173
          %s176 = ssub.s32 512, 512
          %177 = vsyncadd %s171, %s176
          %s178 = smul.addr %s25, 128
          %s179 = scalar_lea.hbm %s1, %s178
          %s180 = sshll.u32 %s174, 4
          %s181 = int_to_ptr.vmem [resolvable:$true] %s180
          %186 = dma.hbm_to_vmem [thread:$0]  %s179, 512, %s181, %s171, 256, 128, 8
        $region24: #{tpu_custom_call.1} parent=19 // pred_fallthru
          _
      $region20: #{tpu_custom_call.1} parent=5 // pred_fallthru
        _
      %p187 = scmp.le.s32.totalorder 1, %s17
      %p188 = scmp.lt.s32.totalorder %s17, 3
      %p189 = pnand %p187, %p188
      %p190 = pneg %p189
      // Predicated region
      $region25: #{tpu_custom_call.1} parent=5 // pred_check
        _
      $region26: #{tpu_custom_call.1} parent=5 // pred_check_branch
        %192 = sbr.rel (%p189) target = $region28
      $region27: #{tpu_custom_call.1} parent=5 // pred_region
        %s193 = ssub.s32 %s17, 1
        // Predicated region
        $region29: #{tpu_custom_call.1} parent=27 // pred_check
          %p194 = pneg %p55
        $region30: #{tpu_custom_call.1} parent=27 // pred_check_branch
          %196 = sbr.rel (%p194) target = $region32
        $region31: #{tpu_custom_call.1} parent=27 // pred_region
          %197 = dma.done [#allocation4], 128
        $region32: #{tpu_custom_call.1} parent=27 // pred_fallthru
          _
        %s198 = sand.u32 %s68, 1
        %s199 = scalar_lea.sflag [#allocation7], %s198
        %s200 = sand.u32 %s68, 1
        %s201 = smul.addr %s200, 32
        %s202 = scalar_lea.vmem [#allocation6], %s201
        // Predicated region
        $region33: #{tpu_custom_call.1} parent=27 // pred_check
          %p203 = pneg %p81
        $region34: #{tpu_custom_call.1} parent=27 // pred_check_branch
          %205 = sbr.rel (%p203) target = $region36
        $region35: #{tpu_custom_call.1} parent=27 // pred_region
          %206 = dma.done %s199, 512
        $region36: #{tpu_custom_call.1} parent=27 // pred_fallthru
          _
        %p207 = pneg %p55
        %p208 = pneg %p52
        %s209 = sand.u32 %s68, 1
        %s210 = scalar_lea.sflag [#allocation7], %s209
        %s211 = sand.u32 %s68, 1
        %s212 = smul.addr %s211, 32
        %s213 = scalar_lea.vmem [#allocation6], %s212
        %p214 = pneg %p81
        %p215 = pneg %p78
        %p216 = pneg %p109
        %p217 = pneg %p106
        %s218 = sand.u32 %s96, 1
        %s219 = scalar_lea.sflag [#allocation5], %s218
        %s220 = sand.u32 %s96, 1
        %s221 = smul.addr %s220, 8
        %s222 = scalar_lea.vmem [#allocation8], %s221
        %p223 = pneg %p135
        %p224 = pneg %p132
        %p225 = scmp.lt.s32.totalorder %s26, 0
        %s226 = scalar_select %p225, %s26, 0
        %s227 = smul.addr %s226, 8
        %s228 = scalar_lea.vmem %s3, %s227
        %p229 = scmp.lt.s32.totalorder %s26, 0
        %s230 = scalar_select %p229, %s26, 0
        %s231 = smul.addr %s230, 8
        %s232 = scalar_lea.vmem %s3, %s231
        %p233 = scmp.eq.s32.totalorder %s27, 0
        // Predicated region
        $region37: #{tpu_custom_call.1} parent=27 // pred_check
          %p234 = pneg %p233
        $region38: #{tpu_custom_call.1} parent=27 // pred_check_branch
          %236 = sbr.rel (%p234) target = $region40
        $region39: #{tpu_custom_call.1} parent=27 // pred_region
          %v237 = vld [vmem:[#allocation3] sm:$0xff]
          %v238 = vmul.f32 %v237, %v237
          %vm239 = vcmask 261120
          %v240 = vsel %vm239, %v238, 0.0
          %241 = vadd.xlane.f32.xlu0 %v240
          %v242 = vpop.xlane.xlu0 %241
          %v243 = vrsqrt.pop %v242
          %v244 = vmul.f32 %v237, %v243
          %245 = vst.msk [vmem:[#allocation2] sm:$0xff] %vm239, %v244
          %vm246 = vcmask 7168
          %247 = vst.msk [vmem:[%s232] sm:$0xff] %vm246, 0.0
        $region40: #{tpu_custom_call.1} parent=27 // pred_fallthru
          _
        %v248 = vld [vmem:[#allocation2] sm:$0xff]
        %v249 = vld [vmem:[%s202] sm:$0xff]
        %v250 = vld [vmem:[%s202 + $0x8] sm:$0xff]
        %v251 = vld [vmem:[%s202 + $0x10] sm:$0xff]
        %v252 = vld [vmem:[%s202 + $0x18] sm:$0xff]
        %vm253 = vcmask 261120
        %v255 = vsel %vm253, %v248, 0
        %257 = vmatprep.subr.mxu0 0.0
        %258 = vmatpush1.msra.mxu0 0.0
        %259 = vmatprep.subr.mxu0 0.0
        %260 = vmatpush1.msra.mxu0 0.0
        %261 = vmatprep.subr.mxu0 0.0
        %262 = vmatpush1.msra.mxu0 0.0
        %263 = vmatprep.subr.mxu0 0.0
        %264 = vmatpush1.msra.mxu0 0.0
        %265 = vmatprep.subr.mxu0 0.0
        %266 = vmatpush1.msra.mxu0 0.0
        %267 = vmatprep.subr.mxu0 0.0
        %268 = vmatpush1.msra.mxu0 0.0
        %269 = vmatprep.subr.mxu0 0.0
        %270 = vmatpush1.msra.mxu0 0.0
        %271 = vmatprep.subr.mxu0 0.0
        %272 = vmatpush1.msra.mxu0 0.0
        %273 = vmatprep.subr.mxu0 0.0
        %274 = vmatpush1.msra.mxu0 0.0
        %275 = vmatprep.subr.mxu0 0.0
        %276 = vmatpush1.msra.mxu0 0.0
        %277 = vmatprep.subr.mxu0 0.0
        %278 = vmatpush1.msra.mxu0 0.0
        %279 = vmatprep.subr.mxu0 0.0
        %280 = vmatpush1.msra.mxu0 0.0
        %281 = vmatprep.subr.mxu0 0.0
        %282 = vmatpush1.msra.mxu0 %v252
        %283 = vmatprep.subr.mxu0 0.0
        %284 = vmatpush1.msra.mxu0 %v251
        %285 = vmatprep.subr.mxu0 0.0
        %286 = vmatpush1.msra.mxu0 %v250
        %287 = vmatprep.subr.mxu0 0.0
        %288 = vmatpush1.msra.mxu0 %v249
        %289 = vmatprep.subr.mxu0 0.0
        %290 = vmatpush2.msra.mxu0 0.0
        %291 = vmatprep.subr.mxu0 0.0
        %292 = vmatpush2.msra.mxu0 0.0
        %293 = vmatprep.subr.mxu0 0.0
        %294 = vmatpush2.msra.mxu0 0.0
        %295 = vmatprep.subr.mxu0 0.0
        %296 = vmatpush2.msra.mxu0 0.0
        %297 = vmatprep.subr.mxu0 0.0
        %298 = vmatpush2.msra.mxu0 0.0
        %299 = vmatprep.subr.mxu0 0.0
        %300 = vmatpush2.msra.mxu0 0.0
        %301 = vmatprep.subr.mxu0 0.0
        %302 = vmatpush2.msra.mxu0 0.0
        %303 = vmatprep.subr.mxu0 0.0
        %304 = vmatpush2.msra.mxu0 0.0
        %305 = vmatprep.subr.mxu0 0.0
        %306 = vmatpush2.msra.mxu0 0.0
        %307 = vmatprep.subr.mxu0 0.0
        %308 = vmatpush2.msra.mxu0 0.0
        %309 = vmatprep.subr.mxu0 0.0
        %310 = vmatpush2.msra.mxu0 0.0
        %311 = vmatprep.subr.mxu0 0.0
        %312 = vmatpush2.msra.mxu0 0.0
        %313 = vmatprep.subr.mxu0 0.0
        %314 = vmatpush2.msra.mxu0 0.0
        %315 = vmatprep.subr.mxu0 0.0
        %316 = vmatpush2.msra.mxu0 0.0
        %317 = vmatprep.subr.mxu0 0.0
        %318 = vmatpush2.msra.mxu0 0.0
        %319 = vmatprep.subr.mxu0 0.0
        %320 = vmatpush2.msra.mxu0 0.0
        %321 = vmatprep.mubr.f32.mxu0 0.0
        %322 = vmatmul.mubr.f32.gmra.mxu0 %v255
        %v323 = vpop.f32.mrf.mxu0
        %v324 = vadd.f32 0.0, %v323
        %v325 = vpop.f32.mrf.mxu0
        %326 = vdwg.mxu0
        %327 = vst [vmem:[%s222] sm:$0xff] %v324
        %v328 = vmul.f32 %v324, 14.285714
        %v329 = vld [vmem:[%s232] sm:$0xff]
        %v330 = vmul.f32 %v328, 1.442695
        %v331 = vpow.pop %v330
        %332 = vadd.xlane.f32.xlu0 %v331
        %v333 = vpop.xlane.xlu0 %332
        %v334 = vadd.f32 %v329, %v333
        %vm335 = vcmask 7168
        %336 = vst.msk [vmem:[%s232] sm:$0xff] %vm335, %v334
        %p337 = scmp.eq.s32.totalorder %s27, 1
        // Predicated region
        $region41: #{tpu_custom_call.1} parent=27 // pred_check
          %p338 = pneg %p337
        $region42: #{tpu_custom_call.1} parent=27 // pred_check_branch
          %340 = sbr.rel (%p338) target = $region44
        $region43: #{tpu_custom_call.1} parent=27 // pred_region
          %v341 = vld [vmem:[%s232] sm:$0xff]
          %v342 = vsub.f32 %v341, 56.0
          %343 = vst.msk [vmem:[%s232] sm:$0xff] %vm335, %v342
        $region44: #{tpu_custom_call.1} parent=27 // pred_fallthru
          _
        %s344 = sand.u32 %s96, 1
        %s345 = scalar_lea.sflag [#allocation5], %s344
        %s346 = sand.u32 %s96, 1
        %s347 = smul.addr %s346, 8
        %s348 = scalar_lea.vmem [#allocation8], %s347
        %p349 = scmp.lt.s32.totalorder %s26, 0
        %s350 = scalar_select %p349, %s26, 0
        %s351 = smul.addr %s350, 8
        %s352 = scalar_lea.vmem %s3, %s351
        // Predicated region
        $region45: #{tpu_custom_call.1} parent=27 // pred_check
          %p353 = pneg %p106
        $region46: #{tpu_custom_call.1} parent=27 // pred_check_branch
          %355 = sbr.rel (%p353) target = $region48
        $region47: #{tpu_custom_call.1} parent=27 // pred_region
          %s357 = ssub.s32 128, 128
          %358 = vsyncadd %s345, %s357
          %s359 = smul.addr %s26, 2
          %s360 = sadd.s32 %s27, %s359
          %s361 = smul.addr %s360, 128
          %s362 = scalar_lea.hbm %s2, %s361
          %s364 = sshll.u32 %s348, 4
          %s365 = int_to_ptr.vmem [resolvable:$true] %s364
          %367 = dma.vmem_to_hbm [thread:$0]  %s365, 128, %s362, %s345
        $region48: #{tpu_custom_call.1} parent=27 // pred_fallthru
          _
        // Predicated region
        $region49: #{tpu_custom_call.1} parent=27 // pred_check
          %p368 = pneg %p132
        $region50: #{tpu_custom_call.1} parent=27 // pred_check_branch
          %370 = sbr.rel (%p368) target = $region52
        $region51: #{tpu_custom_call.1} parent=27 // pred_region
          _
        $region52: #{tpu_custom_call.1} parent=27 // pred_fallthru
          _
        // Predicated region
        $region53: #{tpu_custom_call.1} parent=27 // pred_check
          %p371 = pneg %p132
        $region54: #{tpu_custom_call.1} parent=27 // pred_check_branch
          %373 = sbr.rel (%p371) target = $region56
        $region55: #{tpu_custom_call.1} parent=27 // pred_region
          %p374 = scmp.lt.s32.totalorder %s26, 0
          %s375 = scalar_select %p374, %s26, 0
          %s376 = smul.addr %s375, 8
          %s377 = scalar_lea.vmem %s3, %s376
        $region56: #{tpu_custom_call.1} parent=27 // pred_fallthru
          _
      $region28: #{tpu_custom_call.1} parent=5 // pred_fallthru
        _
      %p378 = scmp.le.s32.totalorder 2, %s17
      // Predicated region
      $region57: #{tpu_custom_call.1} parent=5 // pred_check
        %p379 = pneg %p378
      $region58: #{tpu_custom_call.1} parent=5 // pred_check_branch
        %381 = sbr.rel (%p379) target = $region60
      $region59: #{tpu_custom_call.1} parent=5 // pred_region
        %s382 = ssub.s32 %s17, 2
        // Predicated region
        $region61: #{tpu_custom_call.1} parent=59 // pred_check
          %p383 = pneg %p112
        $region62: #{tpu_custom_call.1} parent=59 // pred_check_branch
          %385 = sbr.rel (%p383) target = $region64
        $region63: #{tpu_custom_call.1} parent=59 // pred_region
          %s386 = sand.u32 %s97, 1
          %s387 = scalar_lea.sflag [#allocation5], %s386
          %s388 = sand.u32 %s97, 1
          %s389 = smul.addr %s388, 8
          %s390 = scalar_lea.vmem [#allocation8], %s389
          %391 = dma.done %s387, 128
        $region64: #{tpu_custom_call.1} parent=59 // pred_fallthru
          _
      $region60: #{tpu_custom_call.1} parent=5 // pred_fallthru
        _
    $region6: #{tpu_custom_call.1} parent=1 // loop_footer
      %s21 = sadd.s32 1, %s17
    $region7: #{tpu_custom_call.1} parent=1 // loop_footer_branch
      %16 = sbr.rel target = $region3
    $region8: #{tpu_custom_call.1} parent=1 // loop_exit
      _
    %392 = vsyncpa [#allocation4], 1
    %s393 = scalar_lea.sflag [#allocation4], 1
    %394 = vsyncpa %s393, 1
    %395 = vsyncpa [#allocation7], 1
    %s396 = scalar_lea.sflag [#allocation7], 1
    %397 = vsyncpa %s396, 1
    %398 = vsyncpa [#allocation5], 1
    %s399 = scalar_lea.sflag [#allocation5], 1
    %400 = vsyncpa %s399, 1

</llo_original>
